<compile_context>
chip_gen: v5e
topology: v5e:2x2
jax: 0.10.0
libtpu: 0.0.40
codegen_flags: <defaults>
</compile_context>

<pallas_src>
import jax
import jax.numpy as jnp
from jax.experimental import pallas as pl
from jax.experimental.pallas import tpu as pltpu

EPS = 1e-5
K1 = 0.3
K2 = 0.7

LANE = 128
MAX_TILE_ROWS = 1024      # (tile_r, 128) f32 = 512 KiB per sample per block
PAD_LOGIT = -1.0e4        # exp(-|x|) -> 0, so padded bce == 0 and padded sigmoid == 0


def _round_up(x, m):
    return ((x + m - 1) // m) * m


def _stats_kernel(x_ref, y_ref, acc_ref):
    """x_ref, y_ref: (tn, tile_r, 128) logits / targets.
    acc_ref: (4, tn, 128) lane-dense accumulator, resident across the row axis:
        [0] = sum(target * sigmoid), [1] = sum(sigmoid),
        [2] = sum(target),           [3] = sum(bce)."""

    @pl.when(pl.program_id(1) == 0)
    def _():
        acc_ref[...] = jnp.zeros_like(acc_ref)

    x = x_ref[...].astype(jnp.float32)
    y = y_ref[...].astype(jnp.float32)

    # Shared exp(-|x|) for both sigmoid and the numerically-stable BCE-with-logits
    #   bce = max(x, 0) - x*y + log(1 + exp(-|x|))
    e = jnp.exp(-jnp.abs(x))
    inv = 1.0 / (1.0 + e)
    sig = jnp.where(x >= 0.0, inv, e * inv)
    bce = jnp.maximum(x, 0.0) - x * y + jnp.log1p(e)

    # Reduce only over the sublane (row-tile) axis here; results stay 128-lane
    # dense. The final cross-lane reduce is done once in the wrapper.
    acc_ref[0, :, :] += jnp.sum(y * sig, axis=1)
    acc_ref[1, :, :] += jnp.sum(sig, axis=1)
    acc_ref[2, :, :] += jnp.sum(y, axis=1)
    acc_ref[3, :, :] += jnp.sum(bce, axis=1)


def _compute_stats(pred3, tar3, tn, tile_r):
    n, rows_pad, lane = pred3.shape
    grid = (n // tn, rows_pad // tile_r)

    return pl.pallas_call(
        _stats_kernel,
        out_shape=jax.ShapeDtypeStruct((4, n, lane), jnp.float32),
        grid_spec=pltpu.PrefetchScalarGridSpec(
            num_scalar_prefetch=0,
            grid=grid,
            in_specs=[
                pl.BlockSpec((tn, tile_r, lane), lambda i, j: (i, j, 0)),
                pl.BlockSpec((tn, tile_r, lane), lambda i, j: (i, j, 0)),
            ],
            out_specs=pl.BlockSpec((4, tn, lane), lambda i, j: (0, i, 0)),
        ),
        compiler_params=pltpu.CompilerParams(
            dimension_semantics=("parallel", "arbitrary"),
            vmem_limit_bytes=32 * 1024 * 1024,  # above v5e's 16 MiB default, safe on v7x
        ),
    )(pred3, tar3)


def dice_plus_bce_loss(predict, target, eps=EPS, k1=K1, k2=K2):
    """predict, target: NCHW arrays (logits / targets in [0,1]). Any float dtype."""
    n = predict.shape[0]
    d = 1
    for s in predict.shape[1:]:
        d *= s

    pred = predict.reshape(n, d)
    tar = target.reshape(n, d)

    # Map D onto full (tile_r, 128) tiles; pad if necessary. Padded logits are a
    # large negative constant so their sigmoid and BCE contributions are exactly 0.
    rows = pl.cdiv(d, LANE)
    tile_r = min(MAX_TILE_ROWS, _round_up(rows, 8))
    rows_pad = _round_up(rows, tile_r)
    d_pad = rows_pad * LANE
    if d_pad != d:
        pred = jnp.pad(pred, ((0, 0), (0, d_pad - d)), constant_values=PAD_LOGIT)
        tar = jnp.pad(tar, ((0, 0), (0, d_pad - d)), constant_values=0)

    # Lane-dense (N, rows, 128) layout; keep native dtype, cast inside the kernel.
    pred3 = pred.reshape(n, rows_pad, LANE)
    tar3 = tar.reshape(n, rows_pad, LANE)

    # Batch blocking: gives v7x a parallel axis to shard across its 2 TensorCores
    # when N is large; collapses to a single block for small N.
    tn = 8 if (n % 8 == 0 and n >= 16) else n

    stats = _compute_stats(pred3, tar3, tn, tile_r)   # (4, n, 128)
    stats = jnp.sum(stats, axis=-1)                   # single final lane reduce
    tp, sum_p, sum_t, bce_sum = stats[0], stats[1], stats[2], stats[3]

    bce_mean = jnp.sum(bce_sum) / (n * d)             # _loss1 (mean over original elems)
    fp = sum_p - tp
    fn = sum_t - tp
    dice = (2.0 * tp + eps) / (2.0 * tp + fp + fn + eps)
    dice_mean = jnp.mean(dice)                        # _loss2

    return k1 * dice_mean + k2 * bce_mean


def _reference(predict, target, eps=EPS, k1=K1, k2=K2):
    """Pure-JAX reference mirroring the PyTorch module (for sanity check)."""
    x = predict.astype(jnp.float32)
    y = target.astype(jnp.float32)
    bce = jnp.mean(jnp.maximum(x, 0.0) - x * y + jnp.log1p(jnp.exp(-jnp.abs(x))))
    p = jax.nn.sigmoid(x)
    n = x.shape[0]
    pf = p.reshape(n, -1)
    tf = y.reshape(n, -1)
    tp = jnp.sum(tf * pf, axis=1)
    fp = jnp.sum(pf, axis=1) - tp
    fn = jnp.sum(tf, axis=1) - tp
    dice = (2 * tp + eps) / (2 * tp + fp + fn + eps)
    return k1 * jnp.mean(dice) + k2 * bce


if __name__ == "__main__":
    key = jax.random.PRNGKey(0)
    k_pred, k_tar = jax.random.split(key)

    # NCHW, matching the PyTorch convention.
    shape = (2, 4, 16, 16)
    predict = jax.random.normal(k_pred, shape, dtype=jnp.float32)
    target = jax.random.bernoulli(k_tar, p=0.5, shape=shape).astype(jnp.float32)

    loss = jax.block_until_ready(dice_plus_bce_loss(predict, target))
    ref = _reference(predict, target)
    assert jnp.allclose(loss, ref, atol=1e-5, rtol=1e-5), (loss, ref)

    # Ragged shape (exercises the padding path: D = 300 -> padded to 1024).
    shape2 = (2, 3, 10, 10)
    k_p2, k_t2 = jax.random.split(k_tar)
    predict2 = jax.random.normal(k_p2, shape2, dtype=jnp.float32)
    target2 = jax.random.bernoulli(k_t2, p=0.5, shape=shape2).astype(jnp.float32)
    loss2 = jax.block_until_ready(dice_plus_bce_loss(predict2, target2))
    ref2 = _reference(predict2, target2)
    assert jnp.allclose(loss2, ref2, atol=1e-5, rtol=1e-5), (loss2, ref2)

    print("KERNEL_OK")
</pallas_src>

<mosaic_0001>
module attributes {stable_mosaic.version = 11 : i64} {
  func.func @_stats_kernel(%arg0: i32, %arg1: i32, %arg2: memref<2x8x128xf32, #tpu.memory_space<vmem>>, %arg3: memref<2x8x128xf32, #tpu.memory_space<vmem>>, %arg4: memref<4x2x128xf32, #tpu.memory_space<vmem>>) attributes {dimension_semantics = [#tpu.dimension_semantics<parallel>, #tpu.dimension_semantics<arbitrary>], iteration_bounds = array<i64: 1, 1>, scalar_prefetch = 0 : i64, scratch_operands = 0 : i64, tpu.core_type = #tpu.core_type<tc>, window_params = [{transform_indices = @transform_0, window_bounds = array<i64: 2, 8, 128>}, {transform_indices = @transform_1, window_bounds = array<i64: 2, 8, 128>}, {transform_indices = @transform_2, window_bounds = array<i64: 4, 2, 128>}]} {
    %c0_i32 = arith.constant 0 : i32
    %0 = arith.cmpi eq, %arg1, %c0_i32 : i32
    %1 = arith.extui %0 : i1 to i32
    %c0_i32_0 = arith.constant 0 : i32
    %2 = arith.cmpi ne, %1, %c0_i32_0 : i32
    scf.if %2 {
      %cst_35 = arith.constant 0.000000e+00 : f32
      %52 = vector.broadcast %cst_35 : f32 to vector<4x2x128xf32>
      %c0_36 = arith.constant 0 : index
      %c0_37 = arith.constant 0 : index
      %c0_38 = arith.constant 0 : index
      %53 = vector.load %arg4[%c0_36, %c0_37, %c0_38] : memref<4x2x128xf32, #tpu.memory_space<vmem>>, vector<4x2x128xf32>
      tpu.vector_store %arg4[%c0_36, %c0_37, %c0_38], %52 {strides = array<i32>} : memref<4x2x128xf32, #tpu.memory_space<vmem>>, vector<4x2x128xf32>,
    } else {
    }
    %c0 = arith.constant 0 : index
    %c0_1 = arith.constant 0 : index
    %c0_2 = arith.constant 0 : index
    %3 = vector.load %arg2[%c0, %c0_1, %c0_2] : memref<2x8x128xf32, #tpu.memory_space<vmem>>, vector<2x8x128xf32>
    %c0_3 = arith.constant 0 : index
    %c0_4 = arith.constant 0 : index
    %c0_5 = arith.constant 0 : index
    %4 = vector.load %arg3[%c0_3, %c0_4, %c0_5] : memref<2x8x128xf32, #tpu.memory_space<vmem>>, vector<2x8x128xf32>
    %5 = math.absf %3 : vector<2x8x128xf32>
    %cst = arith.constant 0.000000e+00 : f32
    %6 = vector.broadcast %cst : f32 to vector<2x8x128xf32>
    %7 = arith.subf %6, %5 : vector<2x8x128xf32>
    %8 = math.exp %7 : vector<2x8x128xf32>
    %cst_6 = arith.constant 1.000000e+00 : f32
    %9 = vector.broadcast %cst_6 : f32 to vector<2x8x128xf32>
    %10 = arith.addf %9, %8 : vector<2x8x128xf32>
    %cst_7 = arith.constant 1.000000e+00 : f32
    %11 = vector.broadcast %cst_7 : f32 to vector<2x8x128xf32>
    %12 = arith.divf %11, %10 : vector<2x8x128xf32>
    %cst_8 = arith.constant 0.000000e+00 : f32
    %13 = vector.broadcast %cst_8 : f32 to vector<2x8x128xf32>
    %14 = arith.cmpf oge, %3, %13 : vector<2x8x128xf32>
    %15 = arith.mulf %8, %12 : vector<2x8x128xf32>
    %16 = arith.select %14, %12, %15 : vector<2x8x128xi1>, vector<2x8x128xf32>
    %cst_9 = arith.constant 0.000000e+00 : f32
    %17 = vector.broadcast %cst_9 : f32 to vector<2x8x128xf32>
    %18 = arith.maximumf %3, %17 : vector<2x8x128xf32>
    %19 = arith.mulf %3, %4 : vector<2x8x128xf32>
    %20 = arith.subf %18, %19 : vector<2x8x128xf32>
    %21 = math.log1p %8 : vector<2x8x128xf32>
    %22 = arith.addf %20, %21 : vector<2x8x128xf32>
    %c0_10 = arith.constant 0 : index
    %c0_11 = arith.constant 0 : index
    %c0_12 = arith.constant 0 : index
    %23 = vector.load %arg4[%c0_10, %c0_11, %c0_12] : memref<4x2x128xf32, #tpu.memory_space<vmem>>, vector<1x2x128xf32>
    %24 = vector.shape_cast %23 : vector<1x2x128xf32> to vector<2x128xf32>
    %25 = arith.mulf %4, %16 : vector<2x8x128xf32>
    %cst_13 = arith.constant dense<0.000000e+00> : vector<2x128xf32>
    %26 = vector.multi_reduction <add>, %25, %cst_13 [1] : vector<2x8x128xf32> to vector<2x128xf32>
    %27 = arith.addf %24, %26 : vector<2x128xf32>
    %c0_14 = arith.constant 0 : index
    %c0_15 = arith.constant 0 : index
    %c0_16 = arith.constant 0 : index
    %28 = vector.load %arg4[%c0_14, %c0_15, %c0_16] : memref<4x2x128xf32, #tpu.memory_space<vmem>>, vector<1x2x128xf32>
    %29 = vector.shape_cast %28 : vector<1x2x128xf32> to vector<2x128xf32>
    %30 = vector.shape_cast %27 : vector<2x128xf32> to vector<1x2x128xf32>
    tpu.vector_store %arg4[%c0_14, %c0_15, %c0_16], %30 {strides = array<i32>} : memref<4x2x128xf32, #tpu.memory_space<vmem>>, vector<1x2x128xf32>,
    %c1 = arith.constant 1 : index
    %c0_17 = arith.constant 0 : index
    %c0_18 = arith.constant 0 : index
    %31 = vector.load %arg4[%c1, %c0_17, %c0_18] : memref<4x2x128xf32, #tpu.memory_space<vmem>>, vector<1x2x128xf32>
    %32 = vector.shape_cast %31 : vector<1x2x128xf32> to vector<2x128xf32>
    %cst_19 = arith.constant dense<0.000000e+00> : vector<2x128xf32>
    %33 = vector.multi_reduction <add>, %16, %cst_19 [1] : vector<2x8x128xf32> to vector<2x128xf32>
    %34 = arith.addf %32, %33 : vector<2x128xf32>
    %c1_20 = arith.constant 1 : index
    %c0_21 = arith.constant 0 : index
    %c0_22 = arith.constant 0 : index
    %35 = vector.load %arg4[%c1_20, %c0_21, %c0_22] : memref<4x2x128xf32, #tpu.memory_space<vmem>>, vector<1x2x128xf32>
    %36 = vector.shape_cast %35 : vector<1x2x128xf32> to vector<2x128xf32>
    %37 = vector.shape_cast %34 : vector<2x128xf32> to vector<1x2x128xf32>
    tpu.vector_store %arg4[%c1_20, %c0_21, %c0_22], %37 {strides = array<i32>} : memref<4x2x128xf32, #tpu.memory_space<vmem>>, vector<1x2x128xf32>,
    %c2 = arith.constant 2 : index
    %c0_23 = arith.constant 0 : index
    %c0_24 = arith.constant 0 : index
    %38 = vector.load %arg4[%c2, %c0_23, %c0_24] : memref<4x2x128xf32, #tpu.memory_space<vmem>>, vector<1x2x128xf32>
    %39 = vector.shape_cast %38 : vector<1x2x128xf32> to vector<2x128xf32>
    %cst_25 = arith.constant dense<0.000000e+00> : vector<2x128xf32>
    %40 = vector.multi_reduction <add>, %4, %cst_25 [1] : vector<2x8x128xf32> to vector<2x128xf32>
    %41 = arith.addf %39, %40 : vector<2x128xf32>
    %c2_26 = arith.constant 2 : index
    %c0_27 = arith.constant 0 : index
    %c0_28 = arith.constant 0 : index
    %42 = vector.load %arg4[%c2_26, %c0_27, %c0_28] : memref<4x2x128xf32, #tpu.memory_space<vmem>>, vector<1x2x128xf32>
    %43 = vector.shape_cast %42 : vector<1x2x128xf32> to vector<2x128xf32>
    %44 = vector.shape_cast %41 : vector<2x128xf32> to vector<1x2x128xf32>
    tpu.vector_store %arg4[%c2_26, %c0_27, %c0_28], %44 {strides = array<i32>} : memref<4x2x128xf32, #tpu.memory_space<vmem>>, vector<1x2x128xf32>,
    %c3 = arith.constant 3 : index
    %c0_29 = arith.constant 0 : index
    %c0_30 = arith.constant 0 : index
    %45 = vector.load %arg4[%c3, %c0_29, %c0_30] : memref<4x2x128xf32, #tpu.memory_space<vmem>>, vector<1x2x128xf32>
    %46 = vector.shape_cast %45 : vector<1x2x128xf32> to vector<2x128xf32>
    %cst_31 = arith.constant dense<0.000000e+00> : vector<2x128xf32>
    %47 = vector.multi_reduction <add>, %22, %cst_31 [1] : vector<2x8x128xf32> to vector<2x128xf32>
    %48 = arith.addf %46, %47 : vector<2x128xf32>
    %c3_32 = arith.constant 3 : index
    %c0_33 = arith.constant 0 : index
    %c0_34 = arith.constant 0 : index
    %49 = vector.load %arg4[%c3_32, %c0_33, %c0_34] : memref<4x2x128xf32, #tpu.memory_space<vmem>>, vector<1x2x128xf32>
    %50 = vector.shape_cast %49 : vector<1x2x128xf32> to vector<2x128xf32>
    %51 = vector.shape_cast %48 : vector<2x128xf32> to vector<1x2x128xf32>
    tpu.vector_store %arg4[%c3_32, %c0_33, %c0_34], %51 {strides = array<i32>} : memref<4x2x128xf32, #tpu.memory_space<vmem>>, vector<1x2x128xf32>,
    return
  }
  func.func @transform_0(%arg0: i32, %arg1: i32) -> (i32, i32, i32) {
    %c0_i32 = arith.constant 0 : i32
    %c0_i32_0 = arith.constant 0 : i32
    return %arg0, %arg1, %c0_i32 : i32, i32, i32
  }
  func.func @transform_1(%arg0: i32, %arg1: i32) -> (i32, i32, i32) {
    %c0_i32 = arith.constant 0 : i32
    %c0_i32_0 = arith.constant 0 : i32
    return %arg0, %arg1, %c0_i32 : i32, i32, i32
  }
  func.func @transform_2(%arg0: i32, %arg1: i32) -> (i32, i32, i32) {
    %c0_i32 = arith.constant 0 : i32
    %c0_i32_0 = arith.constant 0 : i32
    %c0_i32_1 = arith.constant 0 : i32
    return %c0_i32, %arg0, %c0_i32_0 : i32, i32, i32
  }
}

</mosaic_0001>

<llo_original>
// kernel: tpu_custom_call.1
$region0: #{tpu_custom_call.1}
  #allocation0 [shape = 'u32[]', space=smem, size = 0x4, offset = 0x4, fixed_abs, tag = 'smem constant byte address 0x4 - core index']
  #allocation1 [shape = 'u32[72,128]{1,0:T(1,128)}', space=vmem, size = 0x9000, scoped, tag = 'internal scratch']
  %s0 = inlined_call_operand.hbm [shape: f32[2,8,128], index: 0, kind: input, shape index: {}]
  %s1 = inlined_call_operand.hbm [shape: f32[2,8,128], index: 1, kind: input, shape index: {}]
  %s2 = inlined_call_operand.hbm [shape: f32[4,2,128], index: 2, kind: output, shape index: {}]
  %s3 = sld [smem:[#allocation0]]
  $region30: #{tpu_custom_call.1} parent=0
    _
  %s5 = ssub.s32 1, %s3
  %s6 = scalar_select 0, %s5, %s3
  $region1: #{tpu_custom_call.1} parent=0
    #allocation2 [shape = 'u8[8192]{0}', space=vmem, size = 0x2000, scoped, tag = 'input window, operand 0, single buffered']
    #allocation3 [shape = 's32[1]{0}', space=sflag, size = 0x4, scoped, tag = 'scoped memory for tpu_custom_call.1']
    #allocation4 [shape = 's32[1]{0}', space=sflag, size = 0x4, scoped, tag = 'scoped memory for tpu_custom_call.1']
    #allocation5 [shape = 'u8[8192]{0}', space=vmem, size = 0x2000, scoped, tag = 'input window, operand 1, single buffered']
    #allocation6 [shape = 's32[1]{0}', space=sflag, size = 0x4, scoped, tag = 'scoped memory for tpu_custom_call.1']
    #allocation7 [shape = 'u8[4096]{0}', space=vmem, size = 0x1000, scoped, tag = 'output window, operand 0, single buffered']
    %7 = vsyncpa [#allocation3], 0
    %8 = vsyncpa [#allocation6], 0
    %9 = vsyncpa [#allocation4], 0
    // Predicated region
    $region2: #{tpu_custom_call.1} parent=1 // pred_check
      _
    $region3: #{tpu_custom_call.1} parent=1 // pred_check_branch
      %11 = sbr.rel (0) target = $region5
    $region4: #{tpu_custom_call.1} parent=1 // pred_region
      %13 = vsyncadd [#allocation3], 0
      %s14 = sshll.u32 %s0, 4
      %s15 = int_to_ptr.hbm [resolvable:$true] %s14
      %s16 = sshll.u32 [#allocation2], 4
      %s17 = int_to_ptr.vmem [resolvable:$true] %s16
      %22 = dma.hbm_to_vmem [thread:$0]  %s15, 256, %s17, [#allocation3], 128, 128, 8
    $region5: #{tpu_custom_call.1} parent=1 // pred_fallthru
      _
    // Predicated region
    $region6: #{tpu_custom_call.1} parent=1 // pred_check
      _
    $region7: #{tpu_custom_call.1} parent=1 // pred_check_branch
      %24 = sbr.rel (0) target = $region9
    $region8: #{tpu_custom_call.1} parent=1 // pred_region
      %26 = vsyncadd [#allocation6], 0
      %s27 = sshll.u32 %s1, 4
      %s28 = int_to_ptr.hbm [resolvable:$true] %s27
      %s29 = sshll.u32 [#allocation5], 4
      %s30 = int_to_ptr.vmem [resolvable:$true] %s29
      %35 = dma.hbm_to_vmem [thread:$0]  %s28, 256, %s30, [#allocation6], 128, 128, 8
    $region9: #{tpu_custom_call.1} parent=1 // pred_fallthru
      _
    // Predicated region
    $region10: #{tpu_custom_call.1} parent=1 // pred_check
      _
    $region11: #{tpu_custom_call.1} parent=1 // pred_check_branch
      %37 = sbr.rel (0) target = $region13
    $region12: #{tpu_custom_call.1} parent=1 // pred_region
      %39 = dma.done [#allocation3], 256
    $region13: #{tpu_custom_call.1} parent=1 // pred_fallthru
      _
    // Predicated region
    $region14: #{tpu_custom_call.1} parent=1 // pred_check
      _
    $region15: #{tpu_custom_call.1} parent=1 // pred_check_branch
      %41 = sbr.rel (0) target = $region17
    $region16: #{tpu_custom_call.1} parent=1 // pred_region
      %43 = dma.done [#allocation6], 256
    $region17: #{tpu_custom_call.1} parent=1 // pred_fallthru
      _
    %p44 = scmp.eq.s32.totalorder 0, 0
    // Predicated region
    $region18: #{tpu_custom_call.1} parent=1 // pred_check
      %p45 = pneg %p44
    $region19: #{tpu_custom_call.1} parent=1 // pred_check_branch
      %47 = sbr.rel (%p45) target = $region21
    $region20: #{tpu_custom_call.1} parent=1 // pred_region
      %48 = vst [vmem:[#allocation7] sm:$0x3] 0.0
      %49 = vst [vmem:[#allocation7 + $0x2] sm:$0x3] 0.0
      %50 = vst [vmem:[#allocation7 + $0x4] sm:$0x3] 0.0
      %51 = vst [vmem:[#allocation7 + $0x6] sm:$0x3] 0.0
    $region21: #{tpu_custom_call.1} parent=1 // pred_fallthru
      _
    %v52 = vld [vmem:[#allocation2] sm:$0xff]
    %v53 = vld [vmem:[#allocation2 + $0x8] sm:$0xff]
    %v54 = vld [vmem:[#allocation5] sm:$0xff]
    %v55 = vld [vmem:[#allocation5 + $0x8] sm:$0xff]
    %v56 = vand.u32 2147483647, %v52
    %v57 = vand.u32 2147483647, %v53
    %v58 = vsub.f32 0.0, %v56
    %v59 = vsub.f32 0.0, %v57
    %v60 = vmul.f32 %v58, 1.442695
    %v61 = vpow.pop %v60
    %v62 = vmul.f32 %v59, 1.442695
    %v63 = vpow.pop %v62
    %v64 = vadd.f32 %v61, 1.0
    %v65 = vadd.f32 %v63, 1.0
    %v66 = vrcp.pop %v64
    %v67 = vmul.f32 %v64, %v66
    %v68 = vsub.f32 1.0, %v67
    %v69 = vmul.f32 %v66, %v68
    %v70 = vadd.f32 %v66, %v69
    %vm71 = vweird.f32 %v64
    %vm72 = vweird.f32 %v66
    %vm73 = vmor %vm71, %vm72
    %v74 = vsel %vm73, %v66, %v70
    %v75 = vand.u32 2147483647, %v64
    %vm76 = vcmp.eq.f32.partialorder %v75, 8.507059e+37
    %v77 = vand.u32 %v64, 2147483648
    %v78 = vor.u32 1.1754944e-38, %v77
    %v79 = vsel %vm76, %v78, %v74
    %v80 = vmul.f32 1.0, %v79
    %v81 = vrcp.pop %v65
    %v82 = vmul.f32 %v65, %v81
    %v83 = vsub.f32 1.0, %v82
    %v84 = vmul.f32 %v81, %v83
    %v85 = vadd.f32 %v81, %v84
    %vm86 = vweird.f32 %v65
    %vm87 = vweird.f32 %v81
    %vm88 = vmor %vm86, %vm87
    %v89 = vsel %vm88, %v81, %v85
    %v90 = vand.u32 2147483647, %v65
    %vm91 = vcmp.eq.f32.partialorder %v90, 8.507059e+37
    %v92 = vand.u32 %v65, 2147483648
    %v93 = vor.u32 1.1754944e-38, %v92
    %v94 = vsel %vm91, %v93, %v89
    %v95 = vmul.f32 1.0, %v94
    %vm96 = vcmp.ge.f32.partialorder %v52, 0.0
    %vm97 = vcmp.ge.f32.partialorder %v53, 0.0
    %v98 = vmul.f32 %v61, %v80
    %v99 = vmul.f32 %v63, %v95
    %v100 = vsel %vm96, %v80, %v98
    %v101 = vsel %vm97, %v95, %v99
    %v102 = vmax.f32 %v52, 0.0
    %v103 = vmax.f32 %v53, 0.0
    %v104 = vmul.f32 %v52, %v54
    %v105 = vmul.f32 %v53, %v55
    %v106 = vsub.f32 %v102, %v104
    %v107 = vsub.f32 %v103, %v105
    %v108 = vadd.f32 %v61, 1.0
    %v109 = vlog2.pop %v108
    %v110 = vmul.f32 %v109, 0.6931472
    %v111 = vmul.f32 -0.5, %v61
    %v112 = vadd.f32 %v111, 1.0
    %v113 = vmul.f32 %v112, %v61
    %v114 = vand.u32 2147483647, %v61
    %vm115 = vcmp.lt.f32.partialorder %v114, 0.0004427343
    %v116 = vsel %vm115, %v113, %v110
    %v117 = vadd.f32 %v63, 1.0
    %v118 = vlog2.pop %v117
    %v119 = vmul.f32 %v118, 0.6931472
    %v120 = vmul.f32 -0.5, %v63
    %v121 = vadd.f32 %v120, 1.0
    %v122 = vmul.f32 %v121, %v63
    %v123 = vand.u32 2147483647, %v63
    %vm124 = vcmp.lt.f32.partialorder %v123, 0.0004427343
    %v125 = vsel %vm124, %v122, %v119
    %v126 = vadd.f32 %v106, %v116
    %v127 = vadd.f32 %v107, %v125
    %v128 = vld [vmem:[#allocation7] sm:$0x3]
    %v129 = vmul.f32 %v54, %v100
    %v130 = vmul.f32 %v55, %v101
    %v131 = vrot.slane %v129, 4
    %v132 = vadd.f32 %v129, %v131
    %v133 = vrot.slane %v132, 2
    %v134 = vadd.f32 %v132, %v133
    %v135 = vrot.slane %v134, 1
    %v136 = vadd.f32 %v134, %v135
    %v137 = vrot.slane %v130, 4
    %v138 = vadd.f32 %v130, %v137
    %v139 = vrot.slane %v138, 2
    %v140 = vadd.f32 %v138, %v139
    %v141 = vrot.slane %v140, 1
    %v142 = vadd.f32 %v140, %v141
    %vm145 = vcmask 1041409
    %v146 = vsel %vm145, %v142, %v136
    %v148 = vadd.f32 %v128, %v146
    %149 = vst [vmem:[#allocation7] sm:$0x3] %v148
    %s150 = scalar_lea.vmem [#allocation7], 2
    %v151 = vld [vmem:[%s150] sm:$0x3]
    %v152 = vrot.slane %v100, 4
    %v153 = vadd.f32 %v100, %v152
    %v154 = vrot.slane %v153, 2
    %v155 = vadd.f32 %v153, %v154
    %v156 = vrot.slane %v155, 1
    %v157 = vadd.f32 %v155, %v156
    %v158 = vrot.slane %v101, 4
    %v159 = vadd.f32 %v101, %v158
    %v160 = vrot.slane %v159, 2
    %v161 = vadd.f32 %v159, %v160
    %v162 = vrot.slane %v161, 1
    %v163 = vadd.f32 %v161, %v162
    %v166 = vsel %vm145, %v163, %v157
    %v168 = vadd.f32 %v151, %v166
    %169 = vst [vmem:[%s150] sm:$0x3] %v168
    %s170 = scalar_lea.vmem [#allocation7], 4
    %v171 = vld [vmem:[%s170] sm:$0x3]
    %v172 = vrot.slane %v54, 4
    %v173 = vadd.f32 %v54, %v172
    %v174 = vrot.slane %v173, 2
    %v175 = vadd.f32 %v173, %v174
    %v176 = vrot.slane %v175, 1
    %v177 = vadd.f32 %v175, %v176
    %v178 = vrot.slane %v55, 4
    %v179 = vadd.f32 %v55, %v178
    %v180 = vrot.slane %v179, 2
    %v181 = vadd.f32 %v179, %v180
    %v182 = vrot.slane %v181, 1
    %v183 = vadd.f32 %v181, %v182
    %v186 = vsel %vm145, %v183, %v177
    %v188 = vadd.f32 %v171, %v186
    %189 = vst [vmem:[%s170] sm:$0x3] %v188
    %s190 = scalar_lea.vmem [#allocation7], 6
    %v191 = vld [vmem:[%s190] sm:$0x3]
    %v192 = vrot.slane %v126, 4
    %v193 = vadd.f32 %v126, %v192
    %v194 = vrot.slane %v193, 2
    %v195 = vadd.f32 %v193, %v194
    %v196 = vrot.slane %v195, 1
    %v197 = vadd.f32 %v195, %v196
    %v198 = vrot.slane %v127, 4
    %v199 = vadd.f32 %v127, %v198
    %v200 = vrot.slane %v199, 2
    %v201 = vadd.f32 %v199, %v200
    %v202 = vrot.slane %v201, 1
    %v203 = vadd.f32 %v201, %v202
    %v206 = vsel %vm145, %v203, %v197
    %v208 = vadd.f32 %v191, %v206
    %209 = vst [vmem:[%s190] sm:$0x3] %v208
    // Predicated region
    $region22: #{tpu_custom_call.1} parent=1 // pred_check
      _
    $region23: #{tpu_custom_call.1} parent=1 // pred_check_branch
      %211 = sbr.rel (0) target = $region25
    $region24: #{tpu_custom_call.1} parent=1 // pred_region
      %213 = vsyncadd [#allocation4], 0
      %s214 = sshll.u32 [#allocation7], 4
      %s215 = int_to_ptr.vmem [resolvable:$true] %s214
      %s216 = sshll.u32 %s2, 4
      %s217 = int_to_ptr.hbm [resolvable:$true] %s216
      %222 = dma.vmem_to_hbm [thread:$0]  %s215, 128, %s217, [#allocation4], 32, 32, 2
    $region25: #{tpu_custom_call.1} parent=1 // pred_fallthru
      _
    // Predicated region
    $region26: #{tpu_custom_call.1} parent=1 // pred_check
      _
    $region27: #{tpu_custom_call.1} parent=1 // pred_check_branch
      %224 = sbr.rel (0) target = $region29
    $region28: #{tpu_custom_call.1} parent=1 // pred_region
      %226 = dma.done [#allocation4], 128
    $region29: #{tpu_custom_call.1} parent=1 // pred_fallthru
      _
    %227 = vsyncpa [#allocation3], 1
    %228 = vsyncpa [#allocation6], 1
    %229 = vsyncpa [#allocation4], 1

</llo_original>
